<compile_context>
chip_gen: v7x
topology: tpu7x:2x2x1
jax: 0.10.0
libtpu: 0.0.40
codegen_flags: <defaults>
</compile_context>

<pallas_src>
import jax
import jax.numpy as jnp
from jax.experimental import pallas as pl
from jax.experimental.pallas import tpu as pltpu

_N_OUT = 11          # fc_type(4) | fc_pn(3) | fc_time(3) | fc_sure(1)
_N_PAD = 128         # lane-dense padded logits width


def model_head_kernel(h_ref, m_ref, w_ref, out_ref, acc_sum, acc_cnt):
    s = pl.program_id(1)

    @pl.when(s == 0)
    def _():
        acc_sum[...] = jnp.zeros_like(acc_sum)
        acc_cnt[...] = jnp.zeros_like(acc_cnt)

    # --- MeanPooling accumulation over the S tile (pure VPU/XLU, hidden under DMA) ---
    h = h_ref[...].astype(jnp.float32)            # (TB, TS, H), bf16 -> f32 on load
    mask = m_ref[...].astype(jnp.float32)         # (TB, TS)    (matches .float())

    acc_sum[...] += jnp.sum(h * mask[:, :, None], axis=1)     # (TB, H)
    acc_cnt[...] += jnp.sum(mask, axis=1, keepdims=True)      # (TB, 1)

    # Dropout(p=0.2) is identity in eval mode (inference semantics).

    # --- epilogue: packed linear heads, run once per B tile ---
    @pl.when(s == pl.num_programs(1) - 1)
    def _():
        cnt = jnp.maximum(acc_cnt[...], 1e-9)                 # torch.clamp(min=1e-9)
        pooled = acc_sum[...] / cnt                           # (TB, H)
        out_ref[...] = jnp.dot(pooled, w_ref[...],
                               preferred_element_type=jnp.float32)   # (TB, 128)


def model_head(last_hidden_state, attention_mask, w_packed, b_packed,
               *, tb=None, ts=None):
    """last_hidden_state: (B,S,H) f32/bf16; attention_mask: (B,S) int;
    w_packed: (H, 11); b_packed: (11,) or (1, 11)."""
    B, S, H = last_hidden_state.shape

    # Tile sizes: production defaults that fit scoped VMEM on v5e/v6e/v7x,
    # snapped to the full dim for small inputs (keeps the (8,128) rule).
    if tb is None:
        tb = B if B < 8 else 8
    if ts is None:
        ts = S if S < 256 else 256
    assert B % tb == 0 and S % ts == 0, "B/S must be divisible by the tile sizes"

    # Pad packed head weights to a lane-dense (H, 128) matrix host-side.
    w_pad = jnp.zeros((H, _N_PAD), dtype=jnp.float32)
    w_pad = w_pad.at[:, :_N_OUT].set(w_packed.astype(jnp.float32))

    logits_pad = pl.pallas_call(
        model_head_kernel,
        out_shape=jax.ShapeDtypeStruct((B, _N_PAD), jnp.float32),
        grid_spec=pltpu.PrefetchScalarGridSpec(
            num_scalar_prefetch=0,
            grid=(B // tb, S // ts),
            in_specs=[
                pl.BlockSpec((tb, ts, H), lambda b, s: (b, s, 0)),   # hidden states
                pl.BlockSpec((tb, ts), lambda b, s: (b, s)),         # attention mask
                pl.BlockSpec((H, _N_PAD), lambda b, s: (0, 0)),      # weights (resident)
            ],
            out_specs=pl.BlockSpec((tb, _N_PAD), lambda b, s: (b, 0)),
            scratch_shapes=[
                pltpu.VMEM((tb, H), jnp.float32),    # sum of masked embeddings
                pltpu.VMEM((tb, 1), jnp.float32),    # mask count
            ],
        ),
        compiler_params=pltpu.CompilerParams(
            dimension_semantics=("parallel", "arbitrary")),
    )(last_hidden_state, attention_mask, w_pad)

    # Bias add + activations on the tiny (B, 11) slice in the wrapper
    # (avoids masked partial stores and 3-4 lane reductions in the kernel).
    logits = logits_pad[:, :_N_OUT] + b_packed.reshape(1, _N_OUT).astype(jnp.float32)
    return {
        'type': jax.nn.log_softmax(logits[:, 0:4], axis=-1),
        'pn':   jax.nn.log_softmax(logits[:, 4:7], axis=-1),
        'time': jax.nn.log_softmax(logits[:, 7:10], axis=-1),
        'sure': jax.nn.sigmoid(logits[:, 10:11]),
    }


def _ref_head(h, mask, w, b):
    h = h.astype(jnp.float32)
    m = mask.astype(jnp.float32)[:, :, None]
    pooled = (h * m).sum(1) / jnp.maximum(m.sum(1), 1e-9)
    logits = pooled @ w.astype(jnp.float32) + b.reshape(1, -1).astype(jnp.float32)
    return {
        'type': jax.nn.log_softmax(logits[:, 0:4], axis=-1),
        'pn':   jax.nn.log_softmax(logits[:, 4:7], axis=-1),
        'time': jax.nn.log_softmax(logits[:, 7:10], axis=-1),
        'sure': jax.nn.sigmoid(logits[:, 10:11]),
    }


def _make_inputs(key, B, S, H, h_dtype):
    k_h, k_m, k_w, k_b = jax.random.split(key, 4)
    # "last_hidden_state" stands in for the AutoModel backbone output.
    # TODO(synk): the pretrained AutoModel backbone itself is not reproduced here.
    h = jax.random.normal(k_h, (B, S, H), dtype=jnp.float32).astype(h_dtype)
    mask = (jax.random.uniform(k_m, (B, S)) > 0.3).astype(jnp.int32)
    bound = 1.0 / jnp.sqrt(jnp.float32(H))
    w = jax.random.uniform(k_w, (H, _N_OUT), minval=-bound, maxval=bound,
                           dtype=jnp.float32)
    b = jax.random.uniform(k_b, (1, _N_OUT), minval=-bound, maxval=bound,
                           dtype=jnp.float32)
    return h, mask, w, b


if __name__ == "__main__":
    key = jax.random.PRNGKey(0)
    k1, k2 = jax.random.split(key)

    # --- small shapes consistent with the module: batch=2, seq=8, hidden=32 ---
    h, mask, w, b = _make_inputs(k1, B=2, S=8, H=32, h_dtype=jnp.float32)
    outs = jax.block_until_ready(model_head(h, mask, w, b))
    refs = _ref_head(h, mask, w, b)
    for kk in ('type', 'pn', 'time', 'sure'):
        assert jnp.allclose(outs[kk], refs[kk], atol=1e-5, rtol=1e-5), kk

    # --- larger bf16 test exercising the (B, S) grid / accumulator path ---
    h, mask, w, b = _make_inputs(k2, B=8, S=512, H=256, h_dtype=jnp.bfloat16)
    outs = jax.block_until_ready(model_head(h, mask, w, b))   # grid = (1, 2)
    refs = _ref_head(h, mask, w, b)
    for kk in ('type', 'pn', 'time', 'sure'):
        assert jnp.allclose(outs[kk], refs[kk], atol=1e-4, rtol=1e-4), kk

    print("KERNEL_OK")
</pallas_src>

<mosaic_0001>
module attributes {stable_mosaic.version = 11 : i64} {
  func.func @model_head_kernel(%arg0: i32, %arg1: i32, %arg2: memref<2x8x32xf32, #tpu.memory_space<vmem>>, %arg3: memref<2x8xi32, #tpu.memory_space<vmem>>, %arg4: memref<32x128xf32, #tpu.memory_space<vmem>>, %arg5: memref<2x128xf32, #tpu.memory_space<vmem>>, %arg6: memref<2x32xf32, #tpu.memory_space<vmem>>, %arg7: memref<2x1xf32, #tpu.memory_space<vmem>>) attributes {dimension_semantics = [#tpu.dimension_semantics<parallel>, #tpu.dimension_semantics<arbitrary>], iteration_bounds = array<i64: 1, 1>, scalar_prefetch = 0 : i64, scratch_operands = 2 : i64, tpu.core_type = #tpu.core_type<tc>, window_params = [{transform_indices = @transform_0, window_bounds = array<i64: 2, 8, 32>}, {transform_indices = @transform_1, window_bounds = array<i64: 2, 8>}, {pipeline_mode = #tpu.pipeline_mode<synchronous>, transform_indices = @transform_2, window_bounds = array<i64: 32, 128>}, {transform_indices = @transform_3, window_bounds = array<i64: 2, 128>}]} {
    %c0_i32 = arith.constant 0 : i32
    %0 = arith.cmpi eq, %arg1, %c0_i32 : i32
    %1 = arith.extui %0 : i1 to i32
    %c0_i32_0 = arith.constant 0 : i32
    %2 = arith.cmpi ne, %1, %c0_i32_0 : i32
    scf.if %2 {
      %cst_16 = arith.constant 0.000000e+00 : f32
      %21 = vector.broadcast %cst_16 : f32 to vector<2x32xf32>
      %c0_17 = arith.constant 0 : index
      %c0_18 = arith.constant 0 : index
      %22 = vector.load %arg6[%c0_17, %c0_18] : memref<2x32xf32, #tpu.memory_space<vmem>>, vector<2x32xf32>
      tpu.vector_store %arg6[%c0_17, %c0_18], %21 {strides = array<i32>} : memref<2x32xf32, #tpu.memory_space<vmem>>, vector<2x32xf32>,
      %cst_19 = arith.constant 0.000000e+00 : f32
      %23 = vector.broadcast %cst_19 : f32 to vector<2x1xf32>
      %c0_20 = arith.constant 0 : index
      %c0_21 = arith.constant 0 : index
      %24 = vector.load %arg7[%c0_20, %c0_21] : memref<2x1xf32, #tpu.memory_space<vmem>>, vector<2x1xf32>
      tpu.vector_store %arg7[%c0_20, %c0_21], %23 {strides = array<i32>} : memref<2x1xf32, #tpu.memory_space<vmem>>, vector<2x1xf32>,
    } else {
    }
    %c0 = arith.constant 0 : index
    %c0_1 = arith.constant 0 : index
    %c0_2 = arith.constant 0 : index
    %3 = vector.load %arg2[%c0, %c0_1, %c0_2] : memref<2x8x32xf32, #tpu.memory_space<vmem>>, vector<2x8x32xf32>
    %c0_3 = arith.constant 0 : index
    %c0_4 = arith.constant 0 : index
    %4 = vector.load %arg3[%c0_3, %c0_4] : memref<2x8xi32, #tpu.memory_space<vmem>>, vector<2x8xi32>
    %5 = arith.sitofp %4 : vector<2x8xi32> to vector<2x8xf32>
    %c0_5 = arith.constant 0 : index
    %c0_6 = arith.constant 0 : index
    %6 = vector.load %arg6[%c0_5, %c0_6] : memref<2x32xf32, #tpu.memory_space<vmem>>, vector<2x32xf32>
    %7 = vector.shape_cast %5 : vector<2x8xf32> to vector<2x8x1xf32>
    %8 = vector.broadcast %7 : vector<2x8x1xf32> to vector<2x8x32xf32>
    %9 = arith.mulf %3, %8 : vector<2x8x32xf32>
    %cst = arith.constant dense<0.000000e+00> : vector<2x32xf32>
    %10 = vector.multi_reduction <add>, %9, %cst [1] : vector<2x8x32xf32> to vector<2x32xf32>
    %11 = arith.addf %6, %10 : vector<2x32xf32>
    %c0_7 = arith.constant 0 : index
    %c0_8 = arith.constant 0 : index
    %12 = vector.load %arg6[%c0_7, %c0_8] : memref<2x32xf32, #tpu.memory_space<vmem>>, vector<2x32xf32>
    tpu.vector_store %arg6[%c0_7, %c0_8], %11 {strides = array<i32>} : memref<2x32xf32, #tpu.memory_space<vmem>>, vector<2x32xf32>,
    %c0_9 = arith.constant 0 : index
    %c0_10 = arith.constant 0 : index
    %13 = vector.load %arg7[%c0_9, %c0_10] : memref<2x1xf32, #tpu.memory_space<vmem>>, vector<2x1xf32>
    %cst_11 = arith.constant dense<0.000000e+00> : vector<2xf32>
    %14 = vector.multi_reduction <add>, %5, %cst_11 [1] : vector<2x8xf32> to vector<2xf32>
    %15 = vector.shape_cast %14 : vector<2xf32> to vector<2x1xf32>
    %16 = arith.addf %13, %15 : vector<2x1xf32>
    %c0_12 = arith.constant 0 : index
    %c0_13 = arith.constant 0 : index
    %17 = vector.load %arg7[%c0_12, %c0_13] : memref<2x1xf32, #tpu.memory_space<vmem>>, vector<2x1xf32>
    tpu.vector_store %arg7[%c0_12, %c0_13], %16 {strides = array<i32>} : memref<2x1xf32, #tpu.memory_space<vmem>>, vector<2x1xf32>,
    %c0_i32_14 = arith.constant 0 : i32
    %18 = arith.cmpi eq, %arg1, %c0_i32_14 : i32
    %19 = arith.extui %18 : i1 to i32
    %c0_i32_15 = arith.constant 0 : i32
    %20 = arith.cmpi ne, %19, %c0_i32_15 : i32
    scf.if %20 {
      %c0_16 = arith.constant 0 : index
      %c0_17 = arith.constant 0 : index
      %21 = vector.load %arg7[%c0_16, %c0_17] : memref<2x1xf32, #tpu.memory_space<vmem>>, vector<2x1xf32>
      %cst_18 = arith.constant 9.99999971E-10 : f32
      %22 = vector.broadcast %cst_18 : f32 to vector<2x1xf32>
      %23 = arith.maximumf %21, %22 : vector<2x1xf32>
      %c0_19 = arith.constant 0 : index
      %c0_20 = arith.constant 0 : index
      %24 = vector.load %arg6[%c0_19, %c0_20] : memref<2x32xf32, #tpu.memory_space<vmem>>, vector<2x32xf32>
      %25 = vector.broadcast %23 : vector<2x1xf32> to vector<2x32xf32>
      %26 = arith.divf %24, %25 : vector<2x32xf32>
      %c0_21 = arith.constant 0 : index
      %c0_22 = arith.constant 0 : index
      %27 = vector.load %arg4[%c0_21, %c0_22] : memref<32x128xf32, #tpu.memory_space<vmem>>, vector<32x128xf32>
      %cst_23 = arith.constant dense<0.000000e+00> : vector<2x128xf32>
      %28 = tpu.matmul %26, %27, %cst_23 {dimension_numbers = #tpu.dot_dimension_numbers<[1], [0], [0], [1], [0, 0, 1, 1], [], []>} : vector<2x32xf32>, vector<32x128xf32>, vector<2x128xf32> -> vector<2x128xf32>
      %c0_24 = arith.constant 0 : index
      %c0_25 = arith.constant 0 : index
      %29 = vector.load %arg5[%c0_24, %c0_25] : memref<2x128xf32, #tpu.memory_space<vmem>>, vector<2x128xf32>
      tpu.vector_store %arg5[%c0_24, %c0_25], %28 {strides = array<i32>} : memref<2x128xf32, #tpu.memory_space<vmem>>, vector<2x128xf32>,
    } else {
    }
    return
  }
  func.func @transform_0(%arg0: i32, %arg1: i32) -> (i32, i32, i32) {
    %c0_i32 = arith.constant 0 : i32
    %c0_i32_0 = arith.constant 0 : i32
    return %arg0, %arg1, %c0_i32 : i32, i32, i32
  }
  func.func @transform_1(%arg0: i32, %arg1: i32) -> (i32, i32) {
    %c0_i32 = arith.constant 0 : i32
    return %arg0, %arg1 : i32, i32
  }
  func.func @transform_2(%arg0: i32, %arg1: i32) -> (i32, i32) {
    %c0_i32 = arith.constant 0 : i32
    %c0_i32_0 = arith.constant 0 : i32
    %c0_i32_1 = arith.constant 0 : i32
    return %c0_i32, %c0_i32_0 : i32, i32
  }
  func.func @transform_3(%arg0: i32, %arg1: i32) -> (i32, i32) {
    %c0_i32 = arith.constant 0 : i32
    %c0_i32_0 = arith.constant 0 : i32
    return %arg0, %c0_i32 : i32, i32
  }
}

</mosaic_0001>

<llo_original>
// kernel: tpu_custom_call.1
$region0: #{tpu_custom_call.1}
  #allocation0 [shape = 'u32[]', space=smem, size = 0x4, offset = 0x4, fixed_abs, tag = 'smem constant byte address 0x4 - core index']
  #allocation1 [shape = 'u32[144,128]{1,0:T(1,128)}', space=vmem, size = 0x12000, scoped, tag = 'internal scratch']
  #allocation2 [shape = 'f32[2,32]{1,0:T(2,128)}', space=vmem, size = 0x400, scoped, tag = 'scratch operand']
  #allocation3 [shape = 'f32[2,1]{1,0:T(2,128)}', space=vmem, size = 0x400, scoped, tag = 'scratch operand']
  %s0 = inlined_call_operand.hbm [shape: f32[2,8,32], index: 0, kind: input, shape index: {}]
  %s1 = inlined_call_operand.vmem [shape: s32[2,8], index: 1, kind: input, shape index: {}]
  %s2 = inlined_call_operand.hbm [shape: f32[32,128], index: 2, kind: input, shape index: {}]
  %s3 = inlined_call_operand.hbm [shape: f32[2,128], index: 3, kind: output, shape index: {}]
  %s4 = sld [smem:[#allocation0]]
  $region38: #{tpu_custom_call.1} parent=0
    _
  %s6 = ssub.s32 1, %s4
  %s7 = scalar_select 0, %s6, %s4
  $region1: #{tpu_custom_call.1} parent=0
    #allocation4 [shape = 'u8[8192]{0}', space=vmem, size = 0x2000, scoped, tag = 'input window, operand 0, single buffered']
    #allocation5 [shape = 's32[1]{0}', space=sflag, size = 0x4, scoped, tag = 'scoped memory for tpu_custom_call.1']
    #allocation6 [shape = 's32[1]{0}', space=sflag, size = 0x4, scoped, tag = 'scoped memory for tpu_custom_call.1']
    #allocation7 [shape = 'u8[16384]{0}', space=vmem, size = 0x4000, scoped, tag = 'input window, operand 2, single buffered']
    #allocation8 [shape = 's32[1]{0}', space=sflag, size = 0x4, scoped, tag = 'scoped memory for tpu_custom_call.1']
    #allocation9 [shape = 'u8[1024]{0}', space=vmem, size = 0x400, scoped, tag = 'output window, operand 0, single buffered']
    %8 = vsyncpa [#allocation5], 0
    %9 = vsyncpa [#allocation8], 0
    %10 = vsyncpa [#allocation6], 0
    // Predicated region
    $region2: #{tpu_custom_call.1} parent=1 // pred_check
      _
    $region3: #{tpu_custom_call.1} parent=1 // pred_check_branch
      %12 = sbr.rel (0) target = $region5
    $region4: #{tpu_custom_call.1} parent=1 // pred_region
      %s14 = ssub.s32 256, 256
      %15 = vsyncadd [#allocation5], %s14
      %s16 = sshll.u32 [#allocation4], 4
      %s17 = int_to_ptr.vmem [resolvable:$true] %s16
      %22 = dma.hbm_to_vmem [thread:$0]  %s0, 256, %s17, [#allocation5], 128, 128, 8
    $region5: #{tpu_custom_call.1} parent=1 // pred_fallthru
      _
    // Predicated region
    $region6: #{tpu_custom_call.1} parent=1 // pred_check
      _
    $region7: #{tpu_custom_call.1} parent=1 // pred_check_branch
      %24 = sbr.rel (0) target = $region9
    $region8: #{tpu_custom_call.1} parent=1 // pred_region
      _
    $region9: #{tpu_custom_call.1} parent=1 // pred_fallthru
      _
    // Predicated region
    $region10: #{tpu_custom_call.1} parent=1 // pred_check
      _
    $region11: #{tpu_custom_call.1} parent=1 // pred_check_branch
      %26 = sbr.rel (0) target = $region13
    $region12: #{tpu_custom_call.1} parent=1 // pred_region
      %s28 = ssub.s32 512, 512
      %29 = vsyncadd [#allocation8], %s28
      %s30 = sshll.u32 [#allocation7], 4
      %s31 = int_to_ptr.vmem [resolvable:$true] %s30
      %36 = dma.hbm_to_vmem [thread:$0]  %s2, 512, %s31, [#allocation8], 128, 128, 8
    $region13: #{tpu_custom_call.1} parent=1 // pred_fallthru
      _
    // Predicated region
    $region14: #{tpu_custom_call.1} parent=1 // pred_check
      _
    $region15: #{tpu_custom_call.1} parent=1 // pred_check_branch
      %38 = sbr.rel (0) target = $region17
    $region16: #{tpu_custom_call.1} parent=1 // pred_region
      %39 = dma.done [#allocation5], 256
    $region17: #{tpu_custom_call.1} parent=1 // pred_fallthru
      _
    // Predicated region
    $region18: #{tpu_custom_call.1} parent=1 // pred_check
      _
    $region19: #{tpu_custom_call.1} parent=1 // pred_check_branch
      %41 = sbr.rel (0) target = $region21
    $region20: #{tpu_custom_call.1} parent=1 // pred_region
      %42 = dma.done [#allocation8], 512
    $region21: #{tpu_custom_call.1} parent=1 // pred_fallthru
      _
    %p43 = scmp.eq.s32.totalorder 0, 0
    // Predicated region
    $region22: #{tpu_custom_call.1} parent=1 // pred_check
      %p44 = pneg %p43
    $region23: #{tpu_custom_call.1} parent=1 // pred_check_branch
      %46 = sbr.rel (%p44) target = $region25
    $region24: #{tpu_custom_call.1} parent=1 // pred_region
      %vm47 = vcmask 254976
      %48 = vst.msk [vmem:[#allocation2] sm:$0x3] %vm47, 0.0
      %vm49 = vcmask 1024
      %50 = vst.msk [vmem:[#allocation3] sm:$0x3] %vm49, 0.0
    $region25: #{tpu_custom_call.1} parent=1 // pred_fallthru
      _
    %v51 = vld [vmem:[#allocation4] sm:$0xff]
    %v52 = vld [vmem:[#allocation4 + $0x8] sm:$0xff]
    %v53 = vld [vmem:[%s1] sm:$0x3]
    %v54 = vcvt.s32.f32 %v53
    %v55 = vld [vmem:[#allocation2] sm:$0x3]
    %v56 = vlaneseq
    %v57 = vshrl.u32 %v56, 7
    %v58 = vsub.s32 0, %v57
    %v59 = vrot.slane %v54, %v58
    %61 = vbcast.lane.b32.xlu0 %v59, 256
    %v62 = vpop.permute.xlu0 %61
    %v63 = vlaneseq
    %v64 = vshrl.u32 %v63, 7
    %v65 = vsub.s32 1, %v64
    %v66 = vrot.slane %v54, %v65
    %68 = vbcast.lane.b32.xlu0 %v66, 256
    %v69 = vpop.permute.xlu0 %68
    %v70 = vmul.f32 %v51, %v62
    %v71 = vmul.f32 %v52, %v69
    %vm72 = vcmask 261120
    %v73 = vsel %vm72, %v70, 0.0
    %v74 = vrot.slane %v73, 4
    %v75 = vadd.f32 %v73, %v74
    %v76 = vrot.slane %v75, 2
    %v77 = vadd.f32 %v75, %v76
    %v78 = vrot.slane %v77, 1
    %v79 = vadd.f32 %v77, %v78
    %v80 = vsel %vm72, %v71, 0.0
    %v81 = vrot.slane %v80, 4
    %v82 = vadd.f32 %v80, %v81
    %v83 = vrot.slane %v82, 2
    %v84 = vadd.f32 %v82, %v83
    %v85 = vrot.slane %v84, 1
    %v86 = vadd.f32 %v84, %v85
    %vm89 = vcmask 1041409
    %v90 = vsel %vm89, %v86, %v79
    %v92 = vadd.f32 %v55, %v90
    %vm93 = vcmask 254976
    %94 = vst.msk [vmem:[#allocation2] sm:$0x3] %vm93, %v92
    %v95 = vld [vmem:[#allocation3] sm:$0x3]
    %vm96 = vcmask 58368
    %v97 = vsel %vm96, %v54, 0.0
    %98 = vadd.xlane.f32.xlu0 %v97
    %v99 = vpop.xlane.xlu0 %98
    %v100 = vadd.f32 %v95, %v99
    %vm101 = vcmask 1024
    %102 = vst.msk [vmem:[#allocation3] sm:$0x3] %vm101, %v100
    // Predicated region
    $region26: #{tpu_custom_call.1} parent=1 // pred_check
      %p103 = pneg %p43
    $region27: #{tpu_custom_call.1} parent=1 // pred_check_branch
      %105 = sbr.rel (%p103) target = $region29
    $region28: #{tpu_custom_call.1} parent=1 // pred_region
      %v106 = vld [vmem:[#allocation3] sm:$0x3]
      %v107 = vmax.f32 %v106, 1e-09
      %v108 = vld [vmem:[#allocation2] sm:$0x3]
      %110 = vset.pattern.permute.xlu0 0
      %111 = vperm.xlu0 %110, %v107
      %v112 = vpop.permute.xlu0 %111
      %v114 = vrcp.pop %v112
      %v115 = vmul.f32 %v108, %v114
      %v116 = vld [vmem:[#allocation7] sm:$0xff]
      %v117 = vld [vmem:[#allocation7 + $0x8] sm:$0xff]
      %v118 = vld [vmem:[#allocation7 + $0x10] sm:$0xff]
      %v119 = vld [vmem:[#allocation7 + $0x18] sm:$0xff]
      %v121 = vsel %vm72, %v115, 0
      %123 = vmatprep.subr.mxu0 0.0
      %124 = vmatpush1.msra.mxu0 %v116
      %125 = vmatprep.subr.mxu0 0.0
      %126 = vmatpush1.msra.mxu0 %v117
      %127 = vmatprep.subr.mxu0 0.0
      %128 = vmatpush1.msra.mxu0 %v118
      %129 = vmatprep.subr.mxu0 0.0
      %130 = vmatpush1.msra.mxu0 %v119
      %131 = vmatprep.subr.mxu0 0.0
      %132 = vmatpush1.msra.mxu0 0.0
      %133 = vmatprep.subr.mxu0 0.0
      %134 = vmatpush1.msra.mxu0 0.0
      %135 = vmatprep.subr.mxu0 0.0
      %136 = vmatpush1.msra.mxu0 0.0
      %137 = vmatprep.subr.mxu0 0.0
      %138 = vmatpush1.msra.mxu0 0.0
      %139 = vmatprep.subr.mxu0 0.0
      %140 = vmatpush1.msra.mxu0 0.0
      %141 = vmatprep.subr.mxu0 0.0
      %142 = vmatpush1.msra.mxu0 0.0
      %143 = vmatprep.subr.mxu0 0.0
      %144 = vmatpush1.msra.mxu0 0.0
      %145 = vmatprep.subr.mxu0 0.0
      %146 = vmatpush1.msra.mxu0 0.0
      %147 = vmatprep.subr.mxu0 0.0
      %148 = vmatpush1.msra.mxu0 0.0
      %149 = vmatprep.subr.mxu0 0.0
      %150 = vmatpush1.msra.mxu0 0.0
      %151 = vmatprep.subr.mxu0 0.0
      %152 = vmatpush1.msra.mxu0 0.0
      %153 = vmatprep.subr.mxu0 0.0
      %154 = vmatpush1.msra.mxu0 0.0
      %155 = vmatprep.subr.mxu0 0.0
      %156 = vmatpush1.msra.mxu0 0.0
      %157 = vmatprep.subr.mxu0 0.0
      %158 = vmatpush1.msra.mxu0 0.0
      %159 = vmatprep.subr.mxu0 0.0
      %160 = vmatpush1.msra.mxu0 0.0
      %161 = vmatprep.subr.mxu0 0.0
      %162 = vmatpush1.msra.mxu0 0.0
      %163 = vmatprep.subr.mxu0 0.0
      %164 = vmatpush1.msra.mxu0 0.0
      %165 = vmatprep.subr.mxu0 0.0
      %166 = vmatpush1.msra.mxu0 0.0
      %167 = vmatprep.subr.mxu0 0.0
      %168 = vmatpush1.msra.mxu0 0.0
      %169 = vmatprep.subr.mxu0 0.0
      %170 = vmatpush1.msra.mxu0 0.0
      %171 = vmatprep.subr.mxu0 0.0
      %172 = vmatpush1.msra.mxu0 0.0
      %173 = vmatprep.subr.mxu0 0.0
      %174 = vmatpush1.msra.mxu0 0.0
      %175 = vmatprep.subr.mxu0 0.0
      %176 = vmatpush1.msra.mxu0 0.0
      %177 = vmatprep.subr.mxu0 0.0
      %178 = vmatpush1.msra.mxu0 0.0
      %179 = vmatprep.subr.mxu0 0.0
      %180 = vmatpush1.msra.mxu0 0.0
      %181 = vmatprep.subr.mxu0 0.0
      %182 = vmatpush1.msra.mxu0 0.0
      %183 = vmatprep.subr.mxu0 0.0
      %184 = vmatpush1.msra.mxu0 0.0
      %185 = vmatprep.subr.mxu0 0.0
      %186 = vmatpush1.msra.mxu0 0.0
      %187 = vmatprep.mubr.f32.mxu0 0.0
      %188 = vmatmul.mubr.f32.gmra.mrb[0].mxu0 %v121
      %v189 = vpop.f32.mrb[0].mxu0
      %v190 = vadd.f32 0.0, %v189
      %v191 = vpop.f32.mrb[0].mxu0
      %192 = vdwg.mxu0
      %193 = vst [vmem:[#allocation9] sm:$0x3] %v190
    $region29: #{tpu_custom_call.1} parent=1 // pred_fallthru
      _
    // Predicated region
    $region30: #{tpu_custom_call.1} parent=1 // pred_check
      _
    $region31: #{tpu_custom_call.1} parent=1 // pred_check_branch
      %195 = sbr.rel (0) target = $region33
    $region32: #{tpu_custom_call.1} parent=1 // pred_region
      %s197 = ssub.s32 32, 32
      %198 = vsyncadd [#allocation6], %s197
      %s200 = sshll.u32 [#allocation9], 4
      %s201 = int_to_ptr.vmem [resolvable:$true] %s200
      %203 = dma.vmem_to_hbm [thread:$0]  %s201, 32, %s3, [#allocation6]
    $region33: #{tpu_custom_call.1} parent=1 // pred_fallthru
      _
    // Predicated region
    $region34: #{tpu_custom_call.1} parent=1 // pred_check
      _
    $region35: #{tpu_custom_call.1} parent=1 // pred_check_branch
      %205 = sbr.rel (0) target = $region37
    $region36: #{tpu_custom_call.1} parent=1 // pred_region
      %206 = dma.done [#allocation6], 32
    $region37: #{tpu_custom_call.1} parent=1 // pred_fallthru
      _
    %207 = vsyncpa [#allocation5], 1
    %208 = vsyncpa [#allocation8], 1
    %209 = vsyncpa [#allocation6], 1

</llo_original>
